<compile_context>
chip_gen: v7x
topology: tpu7x:2x2x1
jax: 0.10.0
libtpu: 0.0.40
codegen_flags: <defaults>
</compile_context>

<pallas_src>
import jax
import jax.numpy as jnp
from jax.experimental import pallas as pl
from jax.experimental.pallas import tpu as pltpu

# ---------------- configuration (small stand-in shapes) -----------------------
NOISE_DIM = 2          # noise_dim (K)
ACTION_NUM = 2         # action_num (A)
HIDDEN_DIM = 32        # transformer hidden size stand-in (D)
SEQ_LEN = 8
BATCH = 2
N_PER_SAMPLE = 1       # NpS: HyperLayer emits action_dim*hidden_dim -> N = 1
PRIOR_SCALE = 1.0
POSTERIOR_SCALE = 1.0
PAD_ID = 50256         # gpt2 pad id
VOCAB_SMALL = 64       # synthetic embedding table size for the backbone stand-in

NA = N_PER_SAMPLE * ACTION_NUM
NAD = NA * HIDDEN_DIM
OUT_ROWS, OUT_LANES = 8, 128        # lane-dense padded output block
W_COLS = NOISE_DIM * OUT_LANES      # packed, lane-padded weight width (K * 128)


# ---------------- Pallas kernel: row select + hypernet head (single step) -----
def hyper_head_kernel(rows_ref,   # SMEM (B,) int32 scalar-prefetch: flat row per batch
                      z_ref,      # SMEM (B, K) f32 noise
                      x_ref,      # VMEM (B*S, D) full logits2d block
                      w_ref,      # VMEM (D, K*128) combined, transposed, lane-padded weight
                      out_ref):   # VMEM (8, 128) lane-dense padded output block
    # 1) In-VMEM gather of the selected hidden-state row per batch element.
    x_sel = jnp.concatenate(
        [x_ref[pl.ds(rows_ref[b], 1), :] for b in range(BATCH)], axis=0)      # (B, D)

    # 2) Contract D on the MXU. Column k*128 + a of w holds W_comb[k, a, :];
    #    lanes a >= NA are zero-padded, so y is already lane-aligned with out.
    y = jnp.dot(x_sel, w_ref[...], preferred_element_type=jnp.float32)        # (B, K*128)

    # 3) Tiny z-weighted combine over K (scalar splats from SMEM, VPU only),
    #    then ONE unmasked lane-dense store of the composed (8, 128) block.
    rows = []
    for b in range(BATCH):                                                     # static unroll
        acc = z_ref[b, 0] * y[b:b + 1, 0:OUT_LANES]
        for k in range(1, NOISE_DIM):
            acc = acc + z_ref[b, k] * y[b:b + 1, k * OUT_LANES:(k + 1) * OUT_LANES]
        rows.append(acc)                                                       # (1, 128)
    rows.append(jnp.zeros((OUT_ROWS - BATCH, OUT_LANES), jnp.float32))
    out_ref[...] = jnp.concatenate(rows, axis=0)                               # (8, 128)


def hyper_head(flat_rows, z, logits2d, w_pad):
    B = z.shape[0]
    assert B == BATCH, (B, BATCH)
    grid_spec = pltpu.PrefetchScalarGridSpec(
        num_scalar_prefetch=1,
        # Single latency-bound step; a "parallel" B grid axis only pays off at
        # production batch sizes (v7x dual TensorCore).
        grid=(1,),
        in_specs=[
            pl.BlockSpec(memory_space=pltpu.MemorySpace.SMEM),                       # z (scalars)
            pl.BlockSpec((BATCH * SEQ_LEN, HIDDEN_DIM), lambda i, rows: (0, 0)),     # logits2d
            pl.BlockSpec((HIDDEN_DIM, W_COLS), lambda i, rows: (0, 0)),              # w_pad
        ],
        out_specs=pl.BlockSpec((OUT_ROWS, OUT_LANES), lambda i, rows: (0, 0)),
    )
    out_pad = pl.pallas_call(
        hyper_head_kernel,
        out_shape=jax.ShapeDtypeStruct((OUT_ROWS, OUT_LANES), jnp.float32),
        grid_spec=grid_spec,
        compiler_params=pltpu.CompilerParams(dimension_semantics=("arbitrary",)),
    )(flat_rows, z, logits2d, w_pad)
    return out_pad[:B, :NA]                                                    # (B, N*A)


# ---------------- full HyperLLM forward (glue in plain JAX) -------------------
def hyper_llm_forward(noise, input_ids, attention_mask, params):
    # Backbone stand-in (deterministic embedding lookup producing
    # last_hidden_state-shaped features). prior_logits == logits on forward.
    embed = params["embed"]                                                    # (VOCAB_SMALL, D)
    logits = embed[input_ids % VOCAB_SMALL] * attention_mask[..., None].astype(jnp.float32)

    B, S = input_ids.shape

    # c_ind: first position where input_id == PAD_ID (num_padding_at_beginning == 0),
    # else seq_len.
    is_pad = (input_ids == PAD_ID)
    has_pad = jnp.any(is_pad, axis=1)
    first_pad = jnp.argmax(is_pad, axis=1)
    c_inds = jnp.where(has_pad, first_pad, S).astype(jnp.int32)                # (B,)

    # Row actually consumed: out[i][c_ind - 1]; wraps to the LAST row when
    # c_ind == 0, matching torch negative indexing.
    sel_rows = jnp.mod(c_inds - 1, S)
    flat_rows = (jnp.arange(B, dtype=jnp.int32) * S + sel_rows).astype(jnp.int32)

    # Forward-only fusion (prior_x == x, prior branch detached):
    #   posterior*x.(z@Wh) + prior*x.(z@Wp) == x.(z @ (posterior*Wh + prior*Wp)).
    # HyperLayer biases are zero-initialized ('zeros-zeros') and hence omitted.
    # Pre-transpose + lane-pad so the kernel contracts D on the MXU directly:
    #   w_pad[d, k*128 + a] = W_comb[k, a, d]   (a >= NA columns are zero).
    w_comb = POSTERIOR_SCALE * params["w_hyper"] + PRIOR_SCALE * params["w_prior"]   # (K, NA*D)
    w3 = w_comb.reshape(NOISE_DIM, NA, HIDDEN_DIM)                             # (K, NA, D)
    w_t = jnp.transpose(w3, (0, 2, 1))                                         # (K, D, NA)
    w_t = jnp.pad(w_t, ((0, 0), (0, 0), (0, OUT_LANES - NA)))                  # (K, D, 128)
    w_pad = jnp.transpose(w_t, (1, 0, 2)).reshape(HIDDEN_DIM, W_COLS)          # (D, K*128)

    logits2d = logits.reshape(B * S, HIDDEN_DIM).astype(jnp.float32)           # (B*S, D)

    values = hyper_head(flat_rows, noise.astype(jnp.float32), logits2d, w_pad)  # (B, NA)
    return values.reshape(B, N_PER_SAMPLE, ACTION_NUM)[:, 0, :]                # squeeze(1)


# ---------------- deterministic parameter init --------------------------------
def init_params(key):
    k1, k2, k3 = jax.random.split(key, 3)
    # xavier_normal for HyperLayer weights: std = sqrt(2 / (fan_in + fan_out))
    std = (2.0 / (NOISE_DIM + NAD)) ** 0.5
    w_hyper = std * jax.random.normal(k1, (NOISE_DIM, NAD), jnp.float32)
    w_prior = std * jax.random.normal(k2, (NOISE_DIM, NAD), jnp.float32)
    embed = 0.02 * jax.random.normal(k3, (VOCAB_SMALL, HIDDEN_DIM), jnp.float32)
    return {"w_hyper": w_hyper, "w_prior": w_prior, "embed": embed}


if __name__ == "__main__":
    key = jax.random.PRNGKey(0)
    kp, kz, kid = jax.random.split(key, 3)

    params = init_params(kp)

    noise = jax.random.normal(kz, (BATCH, NOISE_DIM), jnp.float32)
    input_ids = jax.random.randint(kid, (BATCH, SEQ_LEN), 0, 50).astype(jnp.int32)
    # batch 0 gets trailing PAD tokens; batch 1 has no PAD (c_ind falls back to seq_len)
    input_ids = input_ids.at[0, SEQ_LEN - 3:].set(PAD_ID)
    attention_mask = (input_ids != PAD_ID).astype(jnp.int32)

    out = hyper_llm_forward(noise, input_ids, attention_mask, params)
    out = jax.block_until_ready(out)
    assert out.shape == (BATCH, ACTION_NUM), out.shape

    # pure-JAX reference of the head (separate posterior/prior thetas, unfused).
    embed = params["embed"]
    logits = embed[input_ids % VOCAB_SMALL] * attention_mask[..., None].astype(jnp.float32)
    is_pad = (input_ids == PAD_ID)
    c_inds = jnp.where(jnp.any(is_pad, axis=1), jnp.argmax(is_pad, axis=1), SEQ_LEN)
    sel = jnp.mod(c_inds - 1, SEQ_LEN)
    x_sel = logits[jnp.arange(BATCH), sel]                                     # (B, D)
    theta = (noise @ params["w_hyper"]).reshape(BATCH, NA, HIDDEN_DIM)
    ptheta = (noise @ params["w_prior"]).reshape(BATCH, NA, HIDDEN_DIM)
    ref = (POSTERIOR_SCALE * jnp.einsum("bd,bad->ba", x_sel, theta)
           + PRIOR_SCALE * jnp.einsum("bd,bad->ba", x_sel, ptheta))            # (B, A)
    # tolerance covers MXU bf16-pass rounding of the f32 contraction
    assert jnp.allclose(out, ref, atol=1e-3, rtol=1e-3), (out, ref)

    print("KERNEL_OK")
</pallas_src>

<mosaic_0001>
module attributes {stable_mosaic.version = 11 : i64} {
  func.func @hyper_head_kernel(%arg0: i32, %arg1: memref<2xi32, #tpu.memory_space<smem>>, %arg2: memref<2x2xf32, #tpu.memory_space<smem>>, %arg3: memref<16x32xf32, #tpu.memory_space<vmem>>, %arg4: memref<32x256xf32, #tpu.memory_space<vmem>>, %arg5: memref<8x128xf32, #tpu.memory_space<vmem>>) attributes {dimension_semantics = [#tpu.dimension_semantics<arbitrary>], iteration_bounds = array<i64: 1>, scalar_prefetch = 1 : i64, scratch_operands = 0 : i64, tpu.core_type = #tpu.core_type<tc>, window_params = [{transform_indices = @transform_0, window_bounds = array<i64: 2, 2>}, {pipeline_mode = #tpu.pipeline_mode<synchronous>, transform_indices = @transform_1, window_bounds = array<i64: 16, 32>}, {pipeline_mode = #tpu.pipeline_mode<synchronous>, transform_indices = @transform_2, window_bounds = array<i64: 32, 256>}, {pipeline_mode = #tpu.pipeline_mode<synchronous>, transform_indices = @transform_3, window_bounds = array<i64: 8, 128>}]} {
    %c0 = arith.constant 0 : index
    %0 = memref.load %arg1[%c0] : memref<2xi32, #tpu.memory_space<smem>>
    %1 = arith.index_cast %0 : i32 to index
    %c0_0 = arith.constant 0 : index
    %2 = vector.load %arg3[%1, %c0_0] : memref<16x32xf32, #tpu.memory_space<vmem>>, vector<1x32xf32>
    %c1 = arith.constant 1 : index
    %3 = memref.load %arg1[%c1] : memref<2xi32, #tpu.memory_space<smem>>
    %4 = arith.index_cast %3 : i32 to index
    %c0_1 = arith.constant 0 : index
    %5 = vector.load %arg3[%4, %c0_1] : memref<16x32xf32, #tpu.memory_space<vmem>>, vector<1x32xf32>
    %6 = tpu.concatenate %2, %5 in 0 : vector<1x32xf32>, vector<1x32xf32> -> vector<2x32xf32>
    %c0_2 = arith.constant 0 : index
    %c0_3 = arith.constant 0 : index
    %7 = vector.load %arg4[%c0_2, %c0_3] : memref<32x256xf32, #tpu.memory_space<vmem>>, vector<32x256xf32>
    %cst = arith.constant dense<0.000000e+00> : vector<2x256xf32>
    %8 = tpu.matmul %6, %7, %cst {dimension_numbers = #tpu.dot_dimension_numbers<[1], [0], [0], [1], [0, 0, 1, 1], [], []>} : vector<2x32xf32>, vector<32x256xf32>, vector<2x256xf32> -> vector<2x256xf32>
    %c0_4 = arith.constant 0 : index
    %c0_5 = arith.constant 0 : index
    %9 = memref.load %arg2[%c0_4, %c0_5] : memref<2x2xf32, #tpu.memory_space<smem>>
    %10 = vector.extract_strided_slice %8 {offsets = [0, 0], sizes = [1, 128], strides = [1, 1]} : vector<2x256xf32> to vector<1x128xf32>
    %11 = vector.broadcast %9 : f32 to vector<1x128xf32>
    %12 = arith.mulf %11, %10 : vector<1x128xf32>
    %c0_6 = arith.constant 0 : index
    %c1_7 = arith.constant 1 : index
    %13 = memref.load %arg2[%c0_6, %c1_7] : memref<2x2xf32, #tpu.memory_space<smem>>
    %14 = vector.extract_strided_slice %8 {offsets = [0, 128], sizes = [1, 128], strides = [1, 1]} : vector<2x256xf32> to vector<1x128xf32>
    %15 = vector.broadcast %13 : f32 to vector<1x128xf32>
    %16 = arith.mulf %15, %14 : vector<1x128xf32>
    %17 = arith.addf %12, %16 : vector<1x128xf32>
    %c1_8 = arith.constant 1 : index
    %c0_9 = arith.constant 0 : index
    %18 = memref.load %arg2[%c1_8, %c0_9] : memref<2x2xf32, #tpu.memory_space<smem>>
    %19 = vector.extract_strided_slice %8 {offsets = [1, 0], sizes = [1, 128], strides = [1, 1]} : vector<2x256xf32> to vector<1x128xf32>
    %20 = vector.broadcast %18 : f32 to vector<1x128xf32>
    %21 = arith.mulf %20, %19 : vector<1x128xf32>
    %c1_10 = arith.constant 1 : index
    %c1_11 = arith.constant 1 : index
    %22 = memref.load %arg2[%c1_10, %c1_11] : memref<2x2xf32, #tpu.memory_space<smem>>
    %23 = vector.extract_strided_slice %8 {offsets = [1, 128], sizes = [1, 128], strides = [1, 1]} : vector<2x256xf32> to vector<1x128xf32>
    %24 = vector.broadcast %22 : f32 to vector<1x128xf32>
    %25 = arith.mulf %24, %23 : vector<1x128xf32>
    %26 = arith.addf %21, %25 : vector<1x128xf32>
    %cst_12 = arith.constant 0.000000e+00 : f32
    %27 = vector.broadcast %cst_12 : f32 to vector<6x128xf32>
    %28 = tpu.concatenate %17, %26, %27 in 0 : vector<1x128xf32>, vector<1x128xf32>, vector<6x128xf32> -> vector<8x128xf32>
    %c0_13 = arith.constant 0 : index
    %c0_14 = arith.constant 0 : index
    %29 = vector.load %arg5[%c0_13, %c0_14] : memref<8x128xf32, #tpu.memory_space<vmem>>, vector<8x128xf32>
    tpu.vector_store %arg5[%c0_13, %c0_14], %28 {strides = array<i32>} : memref<8x128xf32, #tpu.memory_space<vmem>>, vector<8x128xf32>,
    return
  }
  func.func @transform_0(%arg0: i32, %arg1: memref<2xi32, #tpu.memory_space<smem>>) -> (i32, i32) {
    %c0_i32 = arith.constant 0 : i32
    %c0_i32_0 = arith.constant 0 : i32
    %c0_i32_1 = arith.constant 0 : i32
    return %c0_i32, %c0_i32_0 : i32, i32
  }
  func.func @transform_1(%arg0: i32, %arg1: memref<2xi32, #tpu.memory_space<smem>>) -> (i32, i32) {
    %c0_i32 = arith.constant 0 : i32
    %c0_i32_0 = arith.constant 0 : i32
    %c0_i32_1 = arith.constant 0 : i32
    return %c0_i32, %c0_i32_0 : i32, i32
  }
  func.func @transform_2(%arg0: i32, %arg1: memref<2xi32, #tpu.memory_space<smem>>) -> (i32, i32) {
    %c0_i32 = arith.constant 0 : i32
    %c0_i32_0 = arith.constant 0 : i32
    %c0_i32_1 = arith.constant 0 : i32
    return %c0_i32, %c0_i32_0 : i32, i32
  }
  func.func @transform_3(%arg0: i32, %arg1: memref<2xi32, #tpu.memory_space<smem>>) -> (i32, i32) {
    %c0_i32 = arith.constant 0 : i32
    %c0_i32_0 = arith.constant 0 : i32
    %c0_i32_1 = arith.constant 0 : i32
    return %c0_i32, %c0_i32_0 : i32, i32
  }
}

</mosaic_0001>

<llo_original>
// kernel: tpu_custom_call.1
$region0: #{tpu_custom_call.1}
  #allocation0 [shape = 'u32[]', space=smem, size = 0x4, offset = 0x4, fixed_abs, tag = 'smem constant byte address 0x4 - core index']
  #allocation1 [shape = 'u32[144,128]{1,0:T(1,128)}', space=vmem, size = 0x12000, scoped, tag = 'internal scratch']
  #allocation2 [shape = 's32[1]{0}', space=sflag, size = 0x4, scoped, tag = 'scoped memory for tpu_custom_call.1']
  #allocation3 [shape = 'u8[512]{0}', space=smem, size = 0x200, scoped, tag = 'prefetched SMEM operand 0']
  %s0 = inlined_call_operand.hbm [shape: s32[2], index: 0, kind: input, shape index: {}]
  %s1 = inlined_call_operand.vmem [shape: f32[2,2], index: 1, kind: input, shape index: {}]
  %s2 = inlined_call_operand.hbm [shape: f32[16,32], index: 2, kind: input, shape index: {}]
  %s3 = inlined_call_operand.hbm [shape: f32[32,256], index: 3, kind: input, shape index: {}]
  %s4 = inlined_call_operand.hbm [shape: f32[8,128], index: 4, kind: output, shape index: {}]
  %s5 = sld [smem:[#allocation0]]
  $region34: #{tpu_custom_call.1} parent=0
    _
  %s7 = ssub.s32 1, %s5
  %s8 = scalar_select 0, %s7, %s5
  %10 = dma.hbm_to_smem %s0, 16, [#allocation3], [#allocation2]
  %11 = dma.done [#allocation2], 16
  %12 = sfence
  $region1: #{tpu_custom_call.1} parent=0
    #allocation4 [shape = 'u8[1024]{0}', space=smem, size = 0x400, scoped, tag = 'input window, operand 1, single buffered']
    #allocation5 [shape = 's32[1]{0}', space=sflag, size = 0x4, scoped, tag = 'scoped memory for tpu_custom_call.1']
    #allocation6 [shape = 's32[1]{0}', space=sflag, size = 0x4, scoped, tag = 'scoped memory for tpu_custom_call.1']
    #allocation7 [shape = 's32[1]{0}', space=sflag, size = 0x4, scoped, tag = 'scoped memory for tpu_custom_call.1']
    #allocation8 [shape = 'u8[8192]{0}', space=vmem, size = 0x2000, scoped, tag = 'input window, operand 2, single buffered']
    #allocation9 [shape = 'u8[32768]{0}', space=vmem, size = 0x8000, scoped, tag = 'input window, operand 3, single buffered']
    #allocation10 [shape = 's32[1]{0}', space=sflag, size = 0x4, scoped, tag = 'scoped memory for tpu_custom_call.1']
    #allocation11 [shape = 'u8[4096]{0}', space=vmem, size = 0x1000, scoped, tag = 'output window, operand 0, single buffered']
    %13 = vsyncpa [#allocation7], 0
    %14 = vsyncpa [#allocation5], 0
    %15 = vsyncpa [#allocation10], 0
    %16 = vsyncpa [#allocation6], 0
    // Predicated region
    $region2: #{tpu_custom_call.1} parent=1 // pred_check
      _
    $region3: #{tpu_custom_call.1} parent=1 // pred_check_branch
      %18 = sbr.rel (0) target = $region5
    $region4: #{tpu_custom_call.1} parent=1 // pred_region
      %s20 = ssub.s32 32, 32
      %21 = vsyncadd [#allocation7], %s20
      %s23 = sshll.u32 %s1, 4
      %s24 = int_to_ptr.vmem [resolvable:$true] %s23
      %26 = dma.vmem_to_smem %s24, 32, [#allocation4], [#allocation7]
    $region5: #{tpu_custom_call.1} parent=1 // pred_fallthru
      _
    // Predicated region
    $region6: #{tpu_custom_call.1} parent=1 // pred_check
      _
    $region7: #{tpu_custom_call.1} parent=1 // pred_check_branch
      %28 = sbr.rel (0) target = $region9
    $region8: #{tpu_custom_call.1} parent=1 // pred_region
      %s30 = ssub.s32 256, 256
      %31 = vsyncadd [#allocation5], %s30
      %s32 = sshll.u32 [#allocation8], 4
      %s33 = int_to_ptr.vmem [resolvable:$true] %s32
      %38 = dma.hbm_to_vmem [thread:$0]  %s2, 256, %s33, [#allocation5], 128, 128, 8
    $region9: #{tpu_custom_call.1} parent=1 // pred_fallthru
      _
    // Predicated region
    $region10: #{tpu_custom_call.1} parent=1 // pred_check
      _
    $region11: #{tpu_custom_call.1} parent=1 // pred_check_branch
      %40 = sbr.rel (0) target = $region13
    $region12: #{tpu_custom_call.1} parent=1 // pred_region
      %s42 = ssub.s32 1024, 1024
      %43 = vsyncadd [#allocation10], %s42
      %s44 = sshll.u32 [#allocation9], 4
      %s45 = int_to_ptr.vmem [resolvable:$true] %s44
      %50 = dma.hbm_to_vmem [thread:$0]  %s3, 1024, %s45, [#allocation10], 256, 256, 16
    $region13: #{tpu_custom_call.1} parent=1 // pred_fallthru
      _
    // Predicated region
    $region14: #{tpu_custom_call.1} parent=1 // pred_check
      _
    $region15: #{tpu_custom_call.1} parent=1 // pred_check_branch
      %52 = sbr.rel (0) target = $region17
    $region16: #{tpu_custom_call.1} parent=1 // pred_region
      %53 = dma.done [#allocation7], 32
    $region17: #{tpu_custom_call.1} parent=1 // pred_fallthru
      _
    // Predicated region
    $region18: #{tpu_custom_call.1} parent=1 // pred_check
      _
    $region19: #{tpu_custom_call.1} parent=1 // pred_check_branch
      %55 = sbr.rel (0) target = $region21
    $region20: #{tpu_custom_call.1} parent=1 // pred_region
      %56 = dma.done [#allocation5], 256
    $region21: #{tpu_custom_call.1} parent=1 // pred_fallthru
      _
    // Predicated region
    $region22: #{tpu_custom_call.1} parent=1 // pred_check
      _
    $region23: #{tpu_custom_call.1} parent=1 // pred_check_branch
      %58 = sbr.rel (0) target = $region25
    $region24: #{tpu_custom_call.1} parent=1 // pred_region
      %59 = dma.done [#allocation10], 1024
    $region25: #{tpu_custom_call.1} parent=1 // pred_fallthru
      _
    %60 = sfence
    %s61 = sld [smem:[#allocation3]]
    %s62 = scalar_lea.vmem [#allocation8], %s61
    %v63 = vld [vmem:[%s62] sm:$0x1]
    %s64 = sld [smem:[#allocation3 + $0x1]]
    %s65 = scalar_lea.vmem [#allocation8], %s64
    %v66 = vld [vmem:[%s65] sm:$0x1]
    %v68 = vrot.slane %v66, 7
    %vm70 = vcmask 1040384
    %v71 = vsel %vm70, %v63, %v68
    %v72 = vld [vmem:[#allocation9] sm:$0xff]
    %v73 = vld [vmem:[#allocation9 + $0x8] sm:$0xff]
    %v74 = vld [vmem:[#allocation9 + $0x10] sm:$0xff]
    %v75 = vld [vmem:[#allocation9 + $0x18] sm:$0xff]
    %v76 = vld [vmem:[#allocation9 + $0x20] sm:$0xff]
    %v77 = vld [vmem:[#allocation9 + $0x28] sm:$0xff]
    %v78 = vld [vmem:[#allocation9 + $0x30] sm:$0xff]
    %v79 = vld [vmem:[#allocation9 + $0x38] sm:$0xff]
    %vm80 = vcmask 261120
    %v82 = vsel %vm80, %v71, 0
    %84 = vmatprep.subr.mxu0 %v73
    %85 = vmatpush1.msra.mxu0 %v72
    %86 = vmatprep.subr.mxu0 %v75
    %87 = vmatpush1.msra.mxu0 %v74
    %88 = vmatprep.subr.mxu0 %v77
    %89 = vmatpush1.msra.mxu0 %v76
    %90 = vmatprep.subr.mxu0 %v79
    %91 = vmatpush1.msra.mxu0 %v78
    %92 = vmatprep.subr.mxu0 0.0
    %93 = vmatpush1.msra.mxu0 0.0
    %94 = vmatprep.subr.mxu0 0.0
    %95 = vmatpush1.msra.mxu0 0.0
    %96 = vmatprep.subr.mxu0 0.0
    %97 = vmatpush1.msra.mxu0 0.0
    %98 = vmatprep.subr.mxu0 0.0
    %99 = vmatpush1.msra.mxu0 0.0
    %100 = vmatprep.subr.mxu0 0.0
    %101 = vmatpush1.msra.mxu0 0.0
    %102 = vmatprep.subr.mxu0 0.0
    %103 = vmatpush1.msra.mxu0 0.0
    %104 = vmatprep.subr.mxu0 0.0
    %105 = vmatpush1.msra.mxu0 0.0
    %106 = vmatprep.subr.mxu0 0.0
    %107 = vmatpush1.msra.mxu0 0.0
    %108 = vmatprep.subr.mxu0 0.0
    %109 = vmatpush1.msra.mxu0 0.0
    %110 = vmatprep.subr.mxu0 0.0
    %111 = vmatpush1.msra.mxu0 0.0
    %112 = vmatprep.subr.mxu0 0.0
    %113 = vmatpush1.msra.mxu0 0.0
    %114 = vmatprep.subr.mxu0 0.0
    %115 = vmatpush1.msra.mxu0 0.0
    %116 = vmatprep.subr.mxu0 0.0
    %117 = vmatpush1.msra.mxu0 0.0
    %118 = vmatprep.subr.mxu0 0.0
    %119 = vmatpush1.msra.mxu0 0.0
    %120 = vmatprep.subr.mxu0 0.0
    %121 = vmatpush1.msra.mxu0 0.0
    %122 = vmatprep.subr.mxu0 0.0
    %123 = vmatpush1.msra.mxu0 0.0
    %124 = vmatprep.subr.mxu0 0.0
    %125 = vmatpush1.msra.mxu0 0.0
    %126 = vmatprep.subr.mxu0 0.0
    %127 = vmatpush1.msra.mxu0 0.0
    %128 = vmatprep.subr.mxu0 0.0
    %129 = vmatpush1.msra.mxu0 0.0
    %130 = vmatprep.subr.mxu0 0.0
    %131 = vmatpush1.msra.mxu0 0.0
    %132 = vmatprep.subr.mxu0 0.0
    %133 = vmatpush1.msra.mxu0 0.0
    %134 = vmatprep.subr.mxu0 0.0
    %135 = vmatpush1.msra.mxu0 0.0
    %136 = vmatprep.subr.mxu0 0.0
    %137 = vmatpush1.msra.mxu0 0.0
    %138 = vmatprep.subr.mxu0 0.0
    %139 = vmatpush1.msra.mxu0 0.0
    %140 = vmatprep.subr.mxu0 0.0
    %141 = vmatpush1.msra.mxu0 0.0
    %142 = vmatprep.subr.mxu0 0.0
    %143 = vmatpush1.msra.mxu0 0.0
    %144 = vmatprep.subr.mxu0 0.0
    %145 = vmatpush1.msra.mxu0 0.0
    %146 = vmatprep.subr.mxu0 0.0
    %147 = vmatpush1.msra.mxu0 0.0
    %148 = vmatprep.mubr.f32.mxu0 0.0
    %149 = vmatmul.mubr.f32.gmra.mrb[0].mxu0 %v82
    %v150 = vpop.f32.mrb[0].mxu0
    %v151 = vadd.f32 0.0, %v150
    %v152 = vpop.f32.mrb[0].mxu0
    %v153 = vadd.f32 0.0, %v152
    %154 = vdwg.mxu0
    %s155 = sld [smem:[#allocation4]]
    %v156 = vstv %s155
    %v157 = vmul.f32 %v156, %v151
    %s158 = sld [smem:[#allocation4 + $0x1]]
    %v159 = vstv %s158
    %v160 = vmul.f32 %v159, %v153
    %v161 = vadd.f32 %v157, %v160
    %s162 = sld [smem:[#allocation4 + $0x80]]
    %v163 = vstv %s162
    %v164 = vmul.f32 %v163, %v151
    %s165 = sld [smem:[#allocation4 + $0x81]]
    %v166 = vstv %s165
    %v167 = vmul.f32 %v166, %v153
    %v168 = vadd.f32 %v164, %v167
    %v169 = vsel %vm70, %v161, %v168
    %vm170 = vcmask 1041408
    %v171 = vsel %vm170, %v169, 0.0
    %172 = vst [vmem:[#allocation11] sm:$0xff] %v171
    // Predicated region
    $region26: #{tpu_custom_call.1} parent=1 // pred_check
      _
    $region27: #{tpu_custom_call.1} parent=1 // pred_check_branch
      %174 = sbr.rel (0) target = $region29
    $region28: #{tpu_custom_call.1} parent=1 // pred_region
      %s176 = ssub.s32 128, 128
      %177 = vsyncadd [#allocation6], %s176
      %s179 = sshll.u32 [#allocation11], 4
      %s180 = int_to_ptr.vmem [resolvable:$true] %s179
      %182 = dma.vmem_to_hbm [thread:$0]  %s180, 128, %s4, [#allocation6]
    $region29: #{tpu_custom_call.1} parent=1 // pred_fallthru
      _
    // Predicated region
    $region30: #{tpu_custom_call.1} parent=1 // pred_check
      _
    $region31: #{tpu_custom_call.1} parent=1 // pred_check_branch
      %184 = sbr.rel (0) target = $region33
    $region32: #{tpu_custom_call.1} parent=1 // pred_region
      %185 = dma.done [#allocation6], 128
    $region33: #{tpu_custom_call.1} parent=1 // pred_fallthru
      _
    %186 = vsyncpa [#allocation5], 1
    %187 = vsyncpa [#allocation10], 1
    %188 = vsyncpa [#allocation6], 1
    %189 = vsyncpa [#allocation7], 1

</llo_original>
